<compile_context>
chip_gen: v5e
topology: v5e:2x2
jax: 0.10.0
libtpu: 0.0.40
codegen_flags: <defaults>
</compile_context>

<pallas_src>
import jax
import jax.numpy as jnp
from jax.experimental import pallas as pl
from jax.experimental.pallas import tpu as pltpu


def _fused_two_linear_kernel(x1_ref, x2_ref, w1_ref, w2_ref,
                             b1_ref, b2_ref, x3_ref, o_ref):
    # x1_ref, x2_ref: (tb, F) VMEM blocks, batch on the sublane axis
    # w1_ref, w2_ref: (1, F)  VMEM, torch (out_features, in_features) layout
    # b1_ref, b2_ref, x3_ref: (1,) SMEM scalars
    # o_ref: (tb, 1) output block
    x1 = x1_ref[...].astype(jnp.float32)
    x2 = x2_ref[...].astype(jnp.float32)
    w1 = w1_ref[...].astype(jnp.float32)      # (1, F): broadcasts over batch rows
    w2 = w2_ref[...].astype(jnp.float32)

    # VPU broadcast-multiply + cross-lane reduce (XLU) -> (tb, 1).
    y = (jnp.sum(x1 * w1, axis=1, keepdims=True)
         + jnp.sum(x2 * w2, axis=1, keepdims=True))

    bias = b1_ref[0] + b2_ref[0] + x3_ref[0]  # scalar adds on the scalar path
    o_ref[...] = (y + bias).astype(o_ref.dtype)


def multiple_input_with_kwargs_net(x1, x2, w1, b1, w2, b2, x3=10.0, tb=16384):
    """Forward of MultipleInputWithKwargsNet.

    x1, x2: (B, F=10) activations.
    w1, w2: (1, F) weights in PyTorch (out_features, in_features) layout.
    b1, b2: (1,) biases.
    x3: python / 0-d scalar (matches the module's default kwarg).
    Returns (B, 1).
    """
    B, F = x1.shape
    assert x2.shape == (B, F)
    w1 = jnp.asarray(w1, jnp.float32).reshape(1, F)
    w2 = jnp.asarray(w2, jnp.float32).reshape(1, F)
    b1 = jnp.asarray(b1, jnp.float32).reshape(1)
    b2 = jnp.asarray(b2, jnp.float32).reshape(1)
    # TODO(synk): x3 is handled as a scalar (the module's default int kwarg);
    # a per-example tensor x3 would need its own batch-tiled input spec.
    x3 = jnp.asarray(x3, jnp.float32).reshape(1)

    # Single block when the batch fits in one tile (block == full array dims,
    # so any B is legal); otherwise tb must be a sublane multiple (default
    # 16384) and pl.cdiv gives a pipelined grid with a masked partial tail.
    tb_eff = tb if B > tb else B
    grid = (pl.cdiv(B, tb_eff),)

    in_specs = [
        pl.BlockSpec((tb_eff, F), lambda i: (i, 0)),   # x1
        pl.BlockSpec((tb_eff, F), lambda i: (i, 0)),   # x2
        pl.BlockSpec((1, F), lambda i: (0, 0)),        # w1 (revisited -> no re-DMA)
        pl.BlockSpec((1, F), lambda i: (0, 0)),        # w2
        pl.BlockSpec(memory_space=pltpu.MemorySpace.SMEM),  # b1
        pl.BlockSpec(memory_space=pltpu.MemorySpace.SMEM),  # b2
        pl.BlockSpec(memory_space=pltpu.MemorySpace.SMEM),  # x3
    ]
    out_specs = pl.BlockSpec((tb_eff, 1), lambda i: (i, 0))

    out = pl.pallas_call(
        _fused_two_linear_kernel,
        out_shape=jax.ShapeDtypeStruct((B, 1), x1.dtype),
        grid=grid,
        in_specs=in_specs,
        out_specs=out_specs,
        compiler_params=pltpu.CompilerParams(
            dimension_semantics=("parallel",)),
    )(x1, x2, w1, w2, b1, b2, x3)

    return out


def _init_linear_params(key, in_features, out_features):
    # PyTorch default nn.Linear init: U(-1/sqrt(in), 1/sqrt(in)), weight stored
    # as (out_features, in_features), bias as (out_features,).
    kw, kb = jax.random.split(key)
    bound = 1.0 / jnp.sqrt(jnp.float32(in_features))
    w = jax.random.uniform(kw, (out_features, in_features), jnp.float32,
                           minval=-bound, maxval=bound)
    b = jax.random.uniform(kb, (out_features,), jnp.float32,
                           minval=-bound, maxval=bound)
    return w, b


if __name__ == "__main__":
    key = jax.random.PRNGKey(0)
    k_x1, k_x2, k_d1, k_d2, k_y1, k_y2 = jax.random.split(key, 6)

    B, F = 8, 10  # batch=8, in_features=10 (nn.Linear(10, 1))
    x1 = jax.random.normal(k_x1, (B, F), jnp.float32)
    x2 = jax.random.normal(k_x2, (B, F), jnp.float32)

    w1, b1 = _init_linear_params(k_d1, F, 1)
    w2, b2 = _init_linear_params(k_d2, F, 1)

    out = multiple_input_with_kwargs_net(x1, x2, w1, b1, w2, b2)  # x3 defaults to 10
    out = jax.block_until_ready(out)

    ref = x1 @ w1.T + b1 + x2 @ w2.T + b2 + 10.0
    assert out.shape == (B, 1)
    assert jnp.allclose(out, ref, atol=1e-5, rtol=1e-5), "mismatch vs reference"

    # Secondary check: batch not a multiple of 8 (single full-array block path).
    B2 = 300
    y1 = jax.random.normal(k_y1, (B2, F), jnp.float32)
    y2 = jax.random.normal(k_y2, (B2, F), jnp.float32)
    out2 = jax.block_until_ready(
        multiple_input_with_kwargs_net(y1, y2, w1, b1, w2, b2, x3=3.0))
    ref2 = y1 @ w1.T + b1 + y2 @ w2.T + b2 + 3.0
    assert out2.shape == (B2, 1)
    assert jnp.allclose(out2, ref2, atol=1e-5, rtol=1e-5), "mismatch vs reference (B=300)"

    print("KERNEL_OK")
</pallas_src>

<mosaic_0001>
module attributes {stable_mosaic.version = 11 : i64} {
  func.func @_fused_two_linear_kernel(%arg0: i32, %arg1: memref<8x10xf32, #tpu.memory_space<vmem>>, %arg2: memref<8x10xf32, #tpu.memory_space<vmem>>, %arg3: memref<1x10xf32, #tpu.memory_space<vmem>>, %arg4: memref<1x10xf32, #tpu.memory_space<vmem>>, %arg5: memref<1xf32, #tpu.memory_space<smem>>, %arg6: memref<1xf32, #tpu.memory_space<smem>>, %arg7: memref<1xf32, #tpu.memory_space<smem>>, %arg8: memref<8x1xf32, #tpu.memory_space<vmem>>) attributes {dimension_semantics = [#tpu.dimension_semantics<parallel>], iteration_bounds = array<i64: 1>, scalar_prefetch = 0 : i64, scratch_operands = 0 : i64, tpu.core_type = #tpu.core_type<tc>, window_params = [{transform_indices = @transform_0, window_bounds = array<i64: 8, 10>}, {transform_indices = @transform_1, window_bounds = array<i64: 8, 10>}, {pipeline_mode = #tpu.pipeline_mode<synchronous>, transform_indices = @transform_2, window_bounds = array<i64: 1, 10>}, {pipeline_mode = #tpu.pipeline_mode<synchronous>, transform_indices = @transform_3, window_bounds = array<i64: 1, 10>}, {transform_indices = @transform_4, window_bounds = array<i64: 1>}, {transform_indices = @transform_5, window_bounds = array<i64: 1>}, {transform_indices = @transform_6, window_bounds = array<i64: 1>}, {transform_indices = @transform_7, window_bounds = array<i64: 8, 1>}]} {
    %c0 = arith.constant 0 : index
    %c0_0 = arith.constant 0 : index
    %0 = vector.load %arg1[%c0, %c0_0] : memref<8x10xf32, #tpu.memory_space<vmem>>, vector<8x10xf32>
    %c0_1 = arith.constant 0 : index
    %c0_2 = arith.constant 0 : index
    %1 = vector.load %arg2[%c0_1, %c0_2] : memref<8x10xf32, #tpu.memory_space<vmem>>, vector<8x10xf32>
    %c0_3 = arith.constant 0 : index
    %c0_4 = arith.constant 0 : index
    %2 = vector.load %arg3[%c0_3, %c0_4] : memref<1x10xf32, #tpu.memory_space<vmem>>, vector<1x10xf32>
    %c0_5 = arith.constant 0 : index
    %c0_6 = arith.constant 0 : index
    %3 = vector.load %arg4[%c0_5, %c0_6] : memref<1x10xf32, #tpu.memory_space<vmem>>, vector<1x10xf32>
    %4 = vector.broadcast %2 : vector<1x10xf32> to vector<8x10xf32>
    %5 = arith.mulf %0, %4 : vector<8x10xf32>
    %cst = arith.constant dense<0.000000e+00> : vector<8xf32>
    %6 = vector.multi_reduction <add>, %5, %cst [1] : vector<8x10xf32> to vector<8xf32>
    %7 = vector.shape_cast %6 : vector<8xf32> to vector<8x1xf32>
    %8 = vector.broadcast %3 : vector<1x10xf32> to vector<8x10xf32>
    %9 = arith.mulf %1, %8 : vector<8x10xf32>
    %cst_7 = arith.constant dense<0.000000e+00> : vector<8xf32>
    %10 = vector.multi_reduction <add>, %9, %cst_7 [1] : vector<8x10xf32> to vector<8xf32>
    %11 = vector.shape_cast %10 : vector<8xf32> to vector<8x1xf32>
    %12 = arith.addf %7, %11 : vector<8x1xf32>
    %c0_8 = arith.constant 0 : index
    %13 = memref.load %arg5[%c0_8] : memref<1xf32, #tpu.memory_space<smem>>
    %c0_9 = arith.constant 0 : index
    %14 = memref.load %arg6[%c0_9] : memref<1xf32, #tpu.memory_space<smem>>
    %15 = arith.addf %13, %14 : f32
    %c0_10 = arith.constant 0 : index
    %16 = memref.load %arg7[%c0_10] : memref<1xf32, #tpu.memory_space<smem>>
    %17 = arith.addf %15, %16 : f32
    %18 = vector.broadcast %17 : f32 to vector<8x1xf32>
    %19 = arith.addf %12, %18 : vector<8x1xf32>
    %c0_11 = arith.constant 0 : index
    %c0_12 = arith.constant 0 : index
    %20 = vector.load %arg8[%c0_11, %c0_12] : memref<8x1xf32, #tpu.memory_space<vmem>>, vector<8x1xf32>
    tpu.vector_store %arg8[%c0_11, %c0_12], %19 {strides = array<i32>} : memref<8x1xf32, #tpu.memory_space<vmem>>, vector<8x1xf32>,
    return
  }
  func.func @transform_0(%arg0: i32) -> (i32, i32) {
    %c0_i32 = arith.constant 0 : i32
    %c0_i32_0 = arith.constant 0 : i32
    return %arg0, %c0_i32 : i32, i32
  }
  func.func @transform_1(%arg0: i32) -> (i32, i32) {
    %c0_i32 = arith.constant 0 : i32
    %c0_i32_0 = arith.constant 0 : i32
    return %arg0, %c0_i32 : i32, i32
  }
  func.func @transform_2(%arg0: i32) -> (i32, i32) {
    %c0_i32 = arith.constant 0 : i32
    %c0_i32_0 = arith.constant 0 : i32
    %c0_i32_1 = arith.constant 0 : i32
    return %c0_i32, %c0_i32_0 : i32, i32
  }
  func.func @transform_3(%arg0: i32) -> (i32, i32) {
    %c0_i32 = arith.constant 0 : i32
    %c0_i32_0 = arith.constant 0 : i32
    %c0_i32_1 = arith.constant 0 : i32
    return %c0_i32, %c0_i32_0 : i32, i32
  }
  func.func @transform_4(%arg0: i32) -> i32 {
    %c0_i32 = arith.constant 0 : i32
    %c0_i32_0 = arith.constant 0 : i32
    return %c0_i32 : i32
  }
  func.func @transform_5(%arg0: i32) -> i32 {
    %c0_i32 = arith.constant 0 : i32
    %c0_i32_0 = arith.constant 0 : i32
    return %c0_i32 : i32
  }
  func.func @transform_6(%arg0: i32) -> i32 {
    %c0_i32 = arith.constant 0 : i32
    %c0_i32_0 = arith.constant 0 : i32
    return %c0_i32 : i32
  }
  func.func @transform_7(%arg0: i32) -> (i32, i32) {
    %c0_i32 = arith.constant 0 : i32
    %c0_i32_0 = arith.constant 0 : i32
    return %arg0, %c0_i32 : i32, i32
  }
}

</mosaic_0001>

<llo_original>
// kernel: tpu_custom_call.1
$region0: #{tpu_custom_call.1}
  #allocation0 [shape = 'u32[]', space=smem, size = 0x4, offset = 0x4, fixed_abs, tag = 'smem constant byte address 0x4 - core index']
  #allocation1 [shape = 'u32[72,128]{1,0:T(1,128)}', space=vmem, size = 0x9000, scoped, tag = 'internal scratch']
  #allocation2 [shape = 'f32[1]{0:T(128)S(6)}', space=smem, size = 0x200, scoped, tag = 'scoped memory for tpu_custom_call.1']
  #allocation3 [shape = 'f32[1]{0:T(128)S(6)}', space=smem, size = 0x200, scoped, tag = 'scoped memory for tpu_custom_call.1']
  #allocation4 [shape = 'f32[1]{0:T(128)S(6)}', space=smem, size = 0x200, scoped, tag = 'scoped memory for tpu_custom_call.1']
  %s0 = inlined_call_operand.hbm [shape: f32[8,10], index: 0, kind: input, shape index: {}]
  %s1 = inlined_call_operand.hbm [shape: f32[8,10], index: 1, kind: input, shape index: {}]
  %s2 = inlined_call_operand.vmem [shape: f32[1,10], index: 2, kind: input, shape index: {}]
  %s3 = inlined_call_operand.vmem [shape: f32[1,10], index: 3, kind: input, shape index: {}]
  %s4 = inlined_call_operand.<no memory space> [shape: f32[1], index: 4, kind: input, shape index: {}]
  %s5 = inlined_call_operand.<no memory space> [shape: f32[1], index: 5, kind: input, shape index: {}]
  %s6 = inlined_call_operand.<no memory space> [shape: f32[1], index: 6, kind: input, shape index: {}]
  %s7 = inlined_call_operand.vmem [shape: f32[8,1], index: 7, kind: output, shape index: {}]
  %s8 = sld [smem:[#allocation0]]
  $region46: #{tpu_custom_call.1} parent=0
    _
  %s10 = ssub.s32 1, %s8
  %s11 = scalar_select 0, %s10, %s8
  %12 = sst [smem:[#allocation2]] %s4
  %13 = sst [smem:[#allocation3]] %s5
  %14 = sst [smem:[#allocation4]] %s6
  $region1: #{tpu_custom_call.1} parent=0
    #allocation5 [shape = 'u8[4096]{0}', space=vmem, size = 0x1000, scoped, tag = 'input window, operand 0, single buffered']
    #allocation6 [shape = 's32[1]{0}', space=sflag, size = 0x4, scoped, tag = 'scoped memory for tpu_custom_call.1']
    #allocation7 [shape = 'u8[4096]{0}', space=vmem, size = 0x1000, scoped, tag = 'input window, operand 1, single buffered']
    #allocation8 [shape = 's32[1]{0}', space=sflag, size = 0x4, scoped, tag = 'scoped memory for tpu_custom_call.1']
    %15 = vsyncpa [#allocation6], 0
    %16 = vsyncpa [#allocation8], 0
    // Predicated region
    $region2: #{tpu_custom_call.1} parent=1 // pred_check
      _
    $region3: #{tpu_custom_call.1} parent=1 // pred_check_branch
      %18 = sbr.rel (0) target = $region5
    $region4: #{tpu_custom_call.1} parent=1 // pred_region
      %20 = vsyncadd [#allocation6], 0
      %s22 = sshll.u32 %s0, 4
      %s23 = int_to_ptr.hbm [resolvable:$true] %s22
      %s24 = sshll.u32 [#allocation5], 4
      %s25 = int_to_ptr.vmem [resolvable:$true] %s24
      %27 = dma.hbm_to_vmem [thread:$0]  %s23, 128, %s25, [#allocation6]
    $region5: #{tpu_custom_call.1} parent=1 // pred_fallthru
      _
    // Predicated region
    $region6: #{tpu_custom_call.1} parent=1 // pred_check
      _
    $region7: #{tpu_custom_call.1} parent=1 // pred_check_branch
      %29 = sbr.rel (0) target = $region9
    $region8: #{tpu_custom_call.1} parent=1 // pred_region
      %31 = vsyncadd [#allocation8], 0
      %s33 = sshll.u32 %s1, 4
      %s34 = int_to_ptr.hbm [resolvable:$true] %s33
      %s35 = sshll.u32 [#allocation7], 4
      %s36 = int_to_ptr.vmem [resolvable:$true] %s35
      %38 = dma.hbm_to_vmem [thread:$0]  %s34, 128, %s36, [#allocation8]
    $region9: #{tpu_custom_call.1} parent=1 // pred_fallthru
      _
    // Predicated region
    $region10: #{tpu_custom_call.1} parent=1 // pred_check
      _
    $region11: #{tpu_custom_call.1} parent=1 // pred_check_branch
      %40 = sbr.rel (0) target = $region13
    $region12: #{tpu_custom_call.1} parent=1 // pred_region
      _
    $region13: #{tpu_custom_call.1} parent=1 // pred_fallthru
      _
    // Predicated region
    $region14: #{tpu_custom_call.1} parent=1 // pred_check
      _
    $region15: #{tpu_custom_call.1} parent=1 // pred_check_branch
      %42 = sbr.rel (0) target = $region17
    $region16: #{tpu_custom_call.1} parent=1 // pred_region
      _
    $region17: #{tpu_custom_call.1} parent=1 // pred_fallthru
      _
    // Predicated region
    $region18: #{tpu_custom_call.1} parent=1 // pred_check
      _
    $region19: #{tpu_custom_call.1} parent=1 // pred_check_branch
      %44 = sbr.rel (0) target = $region21
    $region20: #{tpu_custom_call.1} parent=1 // pred_region
      _
    $region21: #{tpu_custom_call.1} parent=1 // pred_fallthru
      _
    // Predicated region
    $region22: #{tpu_custom_call.1} parent=1 // pred_check
      _
    $region23: #{tpu_custom_call.1} parent=1 // pred_check_branch
      %46 = sbr.rel (0) target = $region25
    $region24: #{tpu_custom_call.1} parent=1 // pred_region
      _
    $region25: #{tpu_custom_call.1} parent=1 // pred_fallthru
      _
    // Predicated region
    $region26: #{tpu_custom_call.1} parent=1 // pred_check
      _
    $region27: #{tpu_custom_call.1} parent=1 // pred_check_branch
      %48 = sbr.rel (0) target = $region29
    $region28: #{tpu_custom_call.1} parent=1 // pred_region
      _
    $region29: #{tpu_custom_call.1} parent=1 // pred_fallthru
      _
    // Predicated region
    $region30: #{tpu_custom_call.1} parent=1 // pred_check
      _
    $region31: #{tpu_custom_call.1} parent=1 // pred_check_branch
      %50 = sbr.rel (0) target = $region33
    $region32: #{tpu_custom_call.1} parent=1 // pred_region
      %52 = dma.done [#allocation6], 128
    $region33: #{tpu_custom_call.1} parent=1 // pred_fallthru
      _
    // Predicated region
    $region34: #{tpu_custom_call.1} parent=1 // pred_check
      _
    $region35: #{tpu_custom_call.1} parent=1 // pred_check_branch
      %54 = sbr.rel (0) target = $region37
    $region36: #{tpu_custom_call.1} parent=1 // pred_region
      %56 = dma.done [#allocation8], 128
    $region37: #{tpu_custom_call.1} parent=1 // pred_fallthru
      _
    %v57 = vld [vmem:[#allocation5] sm:$0xff]
    %v58 = vld [vmem:[#allocation7] sm:$0xff]
    %v59 = vld [vmem:[%s2] sm:$0x1]
    %v60 = vld [vmem:[%s3] sm:$0x1]
    %v62 = vperm.slane %v59, 0
    %v64 = vmul.f32 %v57, %v62
    %vm65 = vcmask 80896
    %v66 = vsel %vm65, %v64, 0.0
    %67 = vadd.xlane.f32.xlu0 %v66
    %v68 = vpop.xlane.xlu0 %67
    %v70 = vperm.slane %v60, 0
    %v72 = vmul.f32 %v58, %v70
    %v73 = vsel %vm65, %v72, 0.0
    %74 = vadd.xlane.f32.xlu0 %v73
    %v75 = vpop.xlane.xlu0 %74
    %v76 = vadd.f32 %v68, %v75
    %s77 = sld [smem:[#allocation2]]
    %s78 = sld [smem:[#allocation3]]
    %s79 = sadd.f32 %s77, %s78
    %s80 = sld [smem:[#allocation4]]
    %s81 = sadd.f32 %s79, %s80
    %v82 = vstv %s81
    %v83 = vadd.f32 %v76, %v82
    %vm84 = vcmask 7168
    %85 = vst.msk [vmem:[%s7] sm:$0xff] %vm84, %v83
    // Predicated region
    $region38: #{tpu_custom_call.1} parent=1 // pred_check
      _
    $region39: #{tpu_custom_call.1} parent=1 // pred_check_branch
      %87 = sbr.rel (0) target = $region41
    $region40: #{tpu_custom_call.1} parent=1 // pred_region
      _
    $region41: #{tpu_custom_call.1} parent=1 // pred_fallthru
      _
    // Predicated region
    $region42: #{tpu_custom_call.1} parent=1 // pred_check
      _
    $region43: #{tpu_custom_call.1} parent=1 // pred_check_branch
      %89 = sbr.rel (0) target = $region45
    $region44: #{tpu_custom_call.1} parent=1 // pred_region
      _
    $region45: #{tpu_custom_call.1} parent=1 // pred_fallthru
      _
    %90 = vsyncpa [#allocation6], 1
    %91 = vsyncpa [#allocation8], 1

</llo_original>
